<compile_context>
chip_gen: v7x
topology: tpu7x:2x2x1
jax: 0.10.0
libtpu: 0.0.40
codegen_flags: <defaults>
</compile_context>

<pallas_src>
import functools

import numpy as np
import jax
import jax.numpy as jnp
from jax.experimental import pallas as pl
from jax.experimental.pallas import tpu as pltpu


def _silu(x):
    return x * jax.nn.sigmoid(x)


# ----------------------------- fully fused kernel (one invocation) --------------------------
def detector_block_kernel(stride, N, H, W, identity_skip, fuse_im2col,
                          x_ref, w1t_ref, gamma_ref, beta_ref,
                          w2m_ref, b2_ref, wf_ref, b3_ref, masks_ref, o_ref):
    Ch = w1t_ref.shape[0]
    NHW = N * H * W
    Hout = (H - 1) // stride + 1
    Wout = (W - 1) // stride + 1
    lanes_out = N * Hout * Wout

    def subsample(t):  # (C, N*H*W) -> (C, N*Hout*Wout), spatial stride-subsampling
        c = t.shape[0]
        return t.reshape(c, N, H, W)[:, :, ::stride, ::stride].reshape(c, lanes_out)

    x = x_ref[...]                                   # (Cin, N*H*W) f32, lane-dense
    xb = x.astype(jnp.bfloat16)

    # ---- 1x1 conv (no bias): bf16 operands, f32 accumulation -------------------------------
    y1p = jnp.dot(w1t_ref[...], xb, preferred_element_type=jnp.float32)      # (Ch, NHW)

    # ---- BatchNorm (training-mode batch stats, biased var) folded as a per-channel affine --
    inv_m = 1.0 / float(NHW)
    mean = jnp.sum(y1p, axis=1, keepdims=True) * inv_m                        # (Ch, 1)
    var = jnp.maximum(jnp.sum(y1p * y1p, axis=1, keepdims=True) * inv_m - mean * mean, 0.0)
    scale = gamma_ref[...] * jax.lax.rsqrt(var + 1e-5)
    shift = beta_ref[...] - mean * scale
    y1 = _silu(y1p * scale + shift)                                           # (Ch, NHW) f32

    # ---- 3x3 conv, padding=1, stride: im2col via 9 static lane shifts + validity masks -----
    def tap(dy, dx):
        s = (dy - 1) * W + (dx - 1)
        t = y1 if s == 0 else jnp.roll(y1, -s, axis=1)   # t[:, p] = y1[:, (p + s) % NHW]
        if not (dy == 1 and dx == 1):                    # centre tap needs no mask
            t = t * masks_ref[dy * 3 + dx:dy * 3 + dx + 1, :]
        if stride != 1:                                   # subsample BEFORE the matmul
            t = subsample(t)
        return t

    if fuse_im2col:
        patches = jnp.concatenate(
            [tap(dy, dx) for dy in range(3) for dx in range(3)], axis=0
        ).astype(jnp.bfloat16)                            # (9*Ch, lanes_out)
        y2 = jnp.dot(w2m_ref[...], patches, preferred_element_type=jnp.float32)
    else:
        y2 = jnp.zeros((Ch, lanes_out), jnp.float32)
        for dy in range(3):
            for dx in range(3):
                k = dy * 3 + dx
                y2 = y2 + jnp.dot(w2m_ref[:, k * Ch:(k + 1) * Ch],
                                  tap(dy, dx).astype(jnp.bfloat16),
                                  preferred_element_type=jnp.float32)
    y2 = _silu(y2 + b2_ref[...])                          # (Ch, lanes_out) f32

    # ---- final 1x1 conv fused with the skip path, sum, SiLU --------------------------------
    xs = x if stride == 1 else subsample(x)
    if identity_skip:
        z = jnp.dot(wf_ref[...], y2.astype(jnp.bfloat16),
                    preferred_element_type=jnp.float32) + b3_ref[...]
        o_ref[...] = _silu(z + xs).astype(o_ref.dtype)
    else:
        op = jnp.concatenate([y2, xs], axis=0).astype(jnp.bfloat16)   # (Ch+Cin, lanes_out)
        z = jnp.dot(wf_ref[...], op, preferred_element_type=jnp.float32) + b3_ref[...]
        o_ref[...] = _silu(z).astype(o_ref.dtype)


# ------------------------------------- wrapper ----------------------------------------------
def _tap_masks(N, H, W):
    """(9, N*H*W) 0/1 validity masks for the 3x3 taps, built once on host (numpy)."""
    hh = np.arange(H)[:, None]
    ww = np.arange(W)[None, :]
    rows = []
    for dy in range(3):
        for dx in range(3):
            m = ((hh + dy - 1 >= 0) & (hh + dy - 1 < H) &
                 (ww + dx - 1 >= 0) & (ww + dx - 1 < W))
            rows.append(np.tile(m.reshape(H * W), N))
    return np.stack(rows, axis=0).astype(np.float32)


@functools.partial(jax.jit, static_argnames=("stride",))
def detector_block(x_nchw, params, stride=1):
    """Pallas DetectorBlock forward.  x_nchw: (N, Cin, H, W) float32 (PyTorch layout)."""
    N, Cin, H, W = x_nchw.shape
    Ch = params['w1'].shape[0]
    Cout = params['w3'].shape[0]
    Hout = (H - 1) // stride + 1
    Wout = (W - 1) // stride + 1

    identity_skip = params.get('wskip') is None
    if identity_skip:
        assert Cin == Cout and stride == 1, "Identity skip needs Cin == Cout and stride == 1"

    # Channels-first with batch folded into the lane axis: (Cin, N*H*W) lane-dense slab.
    x_cf = jnp.transpose(x_nchw, (1, 0, 2, 3)).reshape(Cin, N * H * W)

    # Weights in (out, in) matmul layout, pre-cast to bf16 (f32 accumulation in-kernel).
    w1t = params['w1'].reshape(Ch, Cin).astype(jnp.bfloat16)
    w2m = jnp.transpose(params['w2'], (0, 2, 3, 1)).reshape(Ch, 9 * Ch).astype(jnp.bfloat16)
    w3t = params['w3'].reshape(Cout, Ch)
    if identity_skip:
        wf = w3t.astype(jnp.bfloat16)                                         # (Cout, Ch)
    else:  # fuse final 1x1 conv and 1x1 skip conv into one matmul, K = Ch + Cin
        wf = jnp.concatenate([w3t, params['wskip'].reshape(Cout, Cin)],
                             axis=1).astype(jnp.bfloat16)                     # (Cout, Ch+Cin)
    gamma = params['gamma'].reshape(Ch, 1).astype(jnp.float32)
    beta = params['beta'].reshape(Ch, 1).astype(jnp.float32)
    b2 = params['b2'].reshape(Ch, 1).astype(jnp.float32)
    b3 = params['b3'].reshape(Cout, 1).astype(jnp.float32)

    # Static 3x3 validity masks: numpy at trace time -> a single XLA constant, no HLO pile.
    masks = jnp.asarray(_tap_masks(N, H, W), dtype=jnp.float32)               # (9, N*H*W)

    # Only materialise the (9*Ch, lanes) im2col while it is small (v7x VMEM headroom);
    # otherwise the kernel accumulates 9 K=Ch matmuls.
    fuse_im2col = (9 * Ch * N * Hout * Wout * 4) <= (8 * 1024 * 1024)

    out_cf = pl.pallas_call(
        functools.partial(detector_block_kernel, stride, N, H, W, identity_skip, fuse_im2col),
        out_shape=jax.ShapeDtypeStruct((Cout, N * Hout * Wout), x_nchw.dtype),
        compiler_params=pltpu.CompilerParams(vmem_limit_bytes=32 * 1024 * 1024),
    )(x_cf, w1t, gamma, beta, w2m, b2, wf, b3, masks)

    return jnp.transpose(out_cf.reshape(Cout, N, Hout, Wout), (1, 0, 2, 3))   # -> NCHW


# ---------------- pure-JAX reference (NCHW, lax.conv) for self-check ----------------
def ref_detector_block(x, p, stride=1):
    def conv(h, w, b=None, s=1, pad=0):
        out = jax.lax.conv_general_dilated(
            h, w, (s, s), ((pad, pad), (pad, pad)),
            dimension_numbers=('NCHW', 'OIHW', 'NCHW'))
        if b is not None:
            out = out + b[None, :, None, None]
        return out

    y = conv(x, p['w1'])
    mean = jnp.mean(y, axis=(0, 2, 3), keepdims=True)
    var = jnp.mean((y - mean) ** 2, axis=(0, 2, 3), keepdims=True)
    y = (y - mean) / jnp.sqrt(var + 1e-5)
    y = y * p['gamma'][None, :, None, None] + p['beta'][None, :, None, None]
    y = _silu(y)
    y = conv(y, p['w2'], p['b2'], s=stride, pad=1)
    y = _silu(y)
    y = conv(y, p['w3'], p['b3'])
    sk = x if p.get('wskip') is None else conv(x, p['wskip'], s=stride)
    return _silu(y + sk)


def make_params(key, channels_in, hidden, channels_out):
    ks = jax.random.split(key, 8)
    p = dict(
        w1=0.2 * jax.random.normal(ks[0], (hidden, channels_in, 1, 1), jnp.float32),
        gamma=1.0 + 0.1 * jax.random.normal(ks[1], (hidden,), jnp.float32),
        beta=0.1 * jax.random.normal(ks[2], (hidden,), jnp.float32),
        w2=0.1 * jax.random.normal(ks[3], (hidden, hidden, 3, 3), jnp.float32),
        b2=0.1 * jax.random.normal(ks[4], (hidden,), jnp.float32),
        w3=0.2 * jax.random.normal(ks[5], (channels_out, hidden, 1, 1), jnp.float32),
        b3=0.1 * jax.random.normal(ks[6], (channels_out,), jnp.float32),
    )
    if channels_in == channels_out:
        p['wskip'] = None   # Identity skip
    else:
        p['wskip'] = 0.2 * jax.random.normal(
            ks[7], (channels_out, channels_in, 1, 1), jnp.float32)
    return p


if __name__ == "__main__":
    key = jax.random.PRNGKey(0)
    kx, kp, kx2, kp2 = jax.random.split(key, 4)

    # DetectorBlock(channels_in=4, hidden_channels=8, channels_out=16, stride=1): conv skip.
    N, Cin, H, W = 2, 4, 16, 16
    hidden, Cout, stride = 8, 16, 1
    x = jax.random.normal(kx, (N, Cin, H, W), jnp.float32)
    params = make_params(kp, Cin, hidden, Cout)

    out = jax.block_until_ready(detector_block(x, params, stride=stride))
    ref = jax.block_until_ready(ref_detector_block(x, params, stride=stride))
    assert out.shape == (N, Cout, H // stride, W // stride)
    assert bool(jnp.all(jnp.isfinite(out)))
    assert bool(jnp.allclose(out, ref, rtol=2e-2, atol=2e-2))

    # DetectorBlock(channels_in=16, hidden_channels=8, channels_out=16, stride=1): Identity.
    x2 = jax.random.normal(kx2, (2, 16, 16, 16), jnp.float32)
    params2 = make_params(kp2, 16, 8, 16)
    out2 = jax.block_until_ready(detector_block(x2, params2, stride=1))
    ref2 = jax.block_until_ready(ref_detector_block(x2, params2, stride=1))
    assert bool(jnp.all(jnp.isfinite(out2)))
    assert bool(jnp.allclose(out2, ref2, rtol=2e-2, atol=2e-2))

    print("KERNEL_OK")
</pallas_src>

<mosaic_0001>
module attributes {stable_mosaic.version = 11 : i64} {
  func.func @detector_block_kernel(%arg0: memref<4x512xf32, #tpu.memory_space<vmem>>, %arg1: memref<8x4xbf16, #tpu.memory_space<vmem>>, %arg2: memref<8x1xf32, #tpu.memory_space<vmem>>, %arg3: memref<8x1xf32, #tpu.memory_space<vmem>>, %arg4: memref<8x72xbf16, #tpu.memory_space<vmem>>, %arg5: memref<8x1xf32, #tpu.memory_space<vmem>>, %arg6: memref<16x12xbf16, #tpu.memory_space<vmem>>, %arg7: memref<16x1xf32, #tpu.memory_space<vmem>>, %arg8: memref<9x512xf32, #tpu.memory_space<vmem>>, %arg9: memref<16x512xf32, #tpu.memory_space<vmem>>) attributes {dimension_semantics = [], scalar_prefetch = 0 : i64, scratch_operands = 0 : i64, tpu.core_type = #tpu.core_type<tc>} {
    %c0 = arith.constant 0 : index
    %c0_0 = arith.constant 0 : index
    %0 = vector.load %arg0[%c0, %c0_0] : memref<4x512xf32, #tpu.memory_space<vmem>>, vector<4x512xf32>
    %1 = arith.truncf %0 : vector<4x512xf32> to vector<4x512xbf16>
    %c0_1 = arith.constant 0 : index
    %c0_2 = arith.constant 0 : index
    %2 = vector.load %arg1[%c0_1, %c0_2] : memref<8x4xbf16, #tpu.memory_space<vmem>>, vector<8x4xbf16>
    %cst = arith.constant dense<0.000000e+00> : vector<8x512xf32>
    %3 = tpu.matmul %2, %1, %cst {dimension_numbers = #tpu.dot_dimension_numbers<[1], [0], [0], [1], [0, 0, 1, 1], [], []>} : vector<8x4xbf16>, vector<4x512xbf16>, vector<8x512xf32> -> vector<8x512xf32>
    %cst_3 = arith.constant dense<0.000000e+00> : vector<8xf32>
    %4 = vector.multi_reduction <add>, %3, %cst_3 [1] : vector<8x512xf32> to vector<8xf32>
    %5 = vector.shape_cast %4 : vector<8xf32> to vector<8x1xf32>
    %cst_4 = arith.constant 0.001953125 : f32
    %6 = vector.broadcast %cst_4 : f32 to vector<8x1xf32>
    %7 = arith.mulf %5, %6 : vector<8x1xf32>
    %8 = arith.mulf %3, %3 : vector<8x512xf32>
    %cst_5 = arith.constant dense<0.000000e+00> : vector<8xf32>
    %9 = vector.multi_reduction <add>, %8, %cst_5 [1] : vector<8x512xf32> to vector<8xf32>
    %10 = vector.shape_cast %9 : vector<8xf32> to vector<8x1xf32>
    %cst_6 = arith.constant 0.001953125 : f32
    %11 = vector.broadcast %cst_6 : f32 to vector<8x1xf32>
    %12 = arith.mulf %10, %11 : vector<8x1xf32>
    %13 = arith.mulf %7, %7 : vector<8x1xf32>
    %14 = arith.subf %12, %13 : vector<8x1xf32>
    %cst_7 = arith.constant 0.000000e+00 : f32
    %15 = vector.broadcast %cst_7 : f32 to vector<8x1xf32>
    %16 = arith.maximumf %14, %15 : vector<8x1xf32>
    %c0_8 = arith.constant 0 : index
    %c0_9 = arith.constant 0 : index
    %17 = vector.load %arg2[%c0_8, %c0_9] : memref<8x1xf32, #tpu.memory_space<vmem>>, vector<8x1xf32>
    %cst_10 = arith.constant 9.99999974E-6 : f32
    %18 = vector.broadcast %cst_10 : f32 to vector<8x1xf32>
    %19 = arith.addf %16, %18 : vector<8x1xf32>
    %20 = math.rsqrt %19 : vector<8x1xf32>
    %21 = arith.mulf %17, %20 : vector<8x1xf32>
    %c0_11 = arith.constant 0 : index
    %c0_12 = arith.constant 0 : index
    %22 = vector.load %arg3[%c0_11, %c0_12] : memref<8x1xf32, #tpu.memory_space<vmem>>, vector<8x1xf32>
    %23 = arith.mulf %7, %21 : vector<8x1xf32>
    %24 = arith.subf %22, %23 : vector<8x1xf32>
    %25 = vector.broadcast %21 : vector<8x1xf32> to vector<8x512xf32>
    %26 = arith.mulf %3, %25 : vector<8x512xf32>
    %27 = vector.broadcast %24 : vector<8x1xf32> to vector<8x512xf32>
    %28 = arith.addf %26, %27 : vector<8x512xf32>
    %29 = arith.negf %28 : vector<8x512xf32>
    %30 = math.exp %29 : vector<8x512xf32>
    %cst_13 = arith.constant 1.000000e+00 : f32
    %31 = vector.broadcast %cst_13 : f32 to vector<8x512xf32>
    %32 = arith.addf %31, %30 : vector<8x512xf32>
    %33 = arith.divf %31, %32 : vector<8x512xf32>
    %34 = arith.mulf %28, %33 : vector<8x512xf32>
    %35 = vector.extract_strided_slice %34 {offsets = [0, 495], sizes = [8, 17], strides = [1, 1]} : vector<8x512xf32> to vector<8x17xf32>
    %36 = vector.extract_strided_slice %34 {offsets = [0, 0], sizes = [8, 495], strides = [1, 1]} : vector<8x512xf32> to vector<8x495xf32>
    %37 = tpu.concatenate %35, %36 in 1 : vector<8x17xf32>, vector<8x495xf32> -> vector<8x512xf32>
    %c0_14 = arith.constant 0 : index
    %c0_15 = arith.constant 0 : index
    %38 = vector.load %arg8[%c0_14, %c0_15] : memref<9x512xf32, #tpu.memory_space<vmem>>, vector<1x512xf32>
    %39 = vector.broadcast %38 : vector<1x512xf32> to vector<8x512xf32>
    %40 = arith.mulf %37, %39 : vector<8x512xf32>
    %41 = vector.extract_strided_slice %34 {offsets = [0, 496], sizes = [8, 16], strides = [1, 1]} : vector<8x512xf32> to vector<8x16xf32>
    %42 = vector.extract_strided_slice %34 {offsets = [0, 0], sizes = [8, 496], strides = [1, 1]} : vector<8x512xf32> to vector<8x496xf32>
    %43 = tpu.concatenate %41, %42 in 1 : vector<8x16xf32>, vector<8x496xf32> -> vector<8x512xf32>
    %c1 = arith.constant 1 : index
    %c0_16 = arith.constant 0 : index
    %44 = vector.load %arg8[%c1, %c0_16] : memref<9x512xf32, #tpu.memory_space<vmem>>, vector<1x512xf32>
    %45 = vector.broadcast %44 : vector<1x512xf32> to vector<8x512xf32>
    %46 = arith.mulf %43, %45 : vector<8x512xf32>
    %47 = vector.extract_strided_slice %34 {offsets = [0, 497], sizes = [8, 15], strides = [1, 1]} : vector<8x512xf32> to vector<8x15xf32>
    %48 = vector.extract_strided_slice %34 {offsets = [0, 0], sizes = [8, 497], strides = [1, 1]} : vector<8x512xf32> to vector<8x497xf32>
    %49 = tpu.concatenate %47, %48 in 1 : vector<8x15xf32>, vector<8x497xf32> -> vector<8x512xf32>
    %c2 = arith.constant 2 : index
    %c0_17 = arith.constant 0 : index
    %50 = vector.load %arg8[%c2, %c0_17] : memref<9x512xf32, #tpu.memory_space<vmem>>, vector<1x512xf32>
    %51 = vector.broadcast %50 : vector<1x512xf32> to vector<8x512xf32>
    %52 = arith.mulf %49, %51 : vector<8x512xf32>
    %53 = vector.extract_strided_slice %34 {offsets = [0, 511], sizes = [8, 1], strides = [1, 1]} : vector<8x512xf32> to vector<8x1xf32>
    %54 = vector.extract_strided_slice %34 {offsets = [0, 0], sizes = [8, 511], strides = [1, 1]} : vector<8x512xf32> to vector<8x511xf32>
    %55 = tpu.concatenate %53, %54 in 1 : vector<8x1xf32>, vector<8x511xf32> -> vector<8x512xf32>
    %c3 = arith.constant 3 : index
    %c0_18 = arith.constant 0 : index
    %56 = vector.load %arg8[%c3, %c0_18] : memref<9x512xf32, #tpu.memory_space<vmem>>, vector<1x512xf32>
    %57 = vector.broadcast %56 : vector<1x512xf32> to vector<8x512xf32>
    %58 = arith.mulf %55, %57 : vector<8x512xf32>
    %59 = vector.extract_strided_slice %34 {offsets = [0, 1], sizes = [8, 511], strides = [1, 1]} : vector<8x512xf32> to vector<8x511xf32>
    %60 = vector.extract_strided_slice %34 {offsets = [0, 0], sizes = [8, 1], strides = [1, 1]} : vector<8x512xf32> to vector<8x1xf32>
    %61 = tpu.concatenate %59, %60 in 1 : vector<8x511xf32>, vector<8x1xf32> -> vector<8x512xf32>
    %c5 = arith.constant 5 : index
    %c0_19 = arith.constant 0 : index
    %62 = vector.load %arg8[%c5, %c0_19] : memref<9x512xf32, #tpu.memory_space<vmem>>, vector<1x512xf32>
    %63 = vector.broadcast %62 : vector<1x512xf32> to vector<8x512xf32>
    %64 = arith.mulf %61, %63 : vector<8x512xf32>
    %65 = vector.extract_strided_slice %34 {offsets = [0, 15], sizes = [8, 497], strides = [1, 1]} : vector<8x512xf32> to vector<8x497xf32>
    %66 = vector.extract_strided_slice %34 {offsets = [0, 0], sizes = [8, 15], strides = [1, 1]} : vector<8x512xf32> to vector<8x15xf32>
    %67 = tpu.concatenate %65, %66 in 1 : vector<8x497xf32>, vector<8x15xf32> -> vector<8x512xf32>
    %c6 = arith.constant 6 : index
    %c0_20 = arith.constant 0 : index
    %68 = vector.load %arg8[%c6, %c0_20] : memref<9x512xf32, #tpu.memory_space<vmem>>, vector<1x512xf32>
    %69 = vector.broadcast %68 : vector<1x512xf32> to vector<8x512xf32>
    %70 = arith.mulf %67, %69 : vector<8x512xf32>
    %71 = vector.extract_strided_slice %34 {offsets = [0, 16], sizes = [8, 496], strides = [1, 1]} : vector<8x512xf32> to vector<8x496xf32>
    %72 = vector.extract_strided_slice %34 {offsets = [0, 0], sizes = [8, 16], strides = [1, 1]} : vector<8x512xf32> to vector<8x16xf32>
    %73 = tpu.concatenate %71, %72 in 1 : vector<8x496xf32>, vector<8x16xf32> -> vector<8x512xf32>
    %c7 = arith.constant 7 : index
    %c0_21 = arith.constant 0 : index
    %74 = vector.load %arg8[%c7, %c0_21] : memref<9x512xf32, #tpu.memory_space<vmem>>, vector<1x512xf32>
    %75 = vector.broadcast %74 : vector<1x512xf32> to vector<8x512xf32>
    %76 = arith.mulf %73, %75 : vector<8x512xf32>
    %77 = vector.extract_strided_slice %34 {offsets = [0, 17], sizes = [8, 495], strides = [1, 1]} : vector<8x512xf32> to vector<8x495xf32>
    %78 = vector.extract_strided_slice %34 {offsets = [0, 0], sizes = [8, 17], strides = [1, 1]} : vector<8x512xf32> to vector<8x17xf32>
    %79 = tpu.concatenate %77, %78 in 1 : vector<8x495xf32>, vector<8x17xf32> -> vector<8x512xf32>
    %c8 = arith.constant 8 : index
    %c0_22 = arith.constant 0 : index
    %80 = vector.load %arg8[%c8, %c0_22] : memref<9x512xf32, #tpu.memory_space<vmem>>, vector<1x512xf32>
    %81 = vector.broadcast %80 : vector<1x512xf32> to vector<8x512xf32>
    %82 = arith.mulf %79, %81 : vector<8x512xf32>
    %83 = tpu.concatenate %40, %46, %52, %58, %34, %64, %70, %76, %82 in 0 : vector<8x512xf32>, vector<8x512xf32>, vector<8x512xf32>, vector<8x512xf32>, vector<8x512xf32>, vector<8x512xf32>, vector<8x512xf32>, vector<8x512xf32>, vector<8x512xf32> -> vector<72x512xf32>
    %84 = arith.truncf %83 : vector<72x512xf32> to vector<72x512xbf16>
    %c0_23 = arith.constant 0 : index
    %c0_24 = arith.constant 0 : index
    %85 = vector.load %arg4[%c0_23, %c0_24] : memref<8x72xbf16, #tpu.memory_space<vmem>>, vector<8x72xbf16>
    %cst_25 = arith.constant dense<0.000000e+00> : vector<8x512xf32>
    %86 = tpu.matmul %85, %84, %cst_25 {dimension_numbers = #tpu.dot_dimension_numbers<[1], [0], [0], [1], [0, 0, 1, 1], [], []>} : vector<8x72xbf16>, vector<72x512xbf16>, vector<8x512xf32> -> vector<8x512xf32>
    %c0_26 = arith.constant 0 : index
    %c0_27 = arith.constant 0 : index
    %87 = vector.load %arg5[%c0_26, %c0_27] : memref<8x1xf32, #tpu.memory_space<vmem>>, vector<8x1xf32>
    %88 = vector.broadcast %87 : vector<8x1xf32> to vector<8x512xf32>
    %89 = arith.addf %86, %88 : vector<8x512xf32>
    %90 = arith.negf %89 : vector<8x512xf32>
    %91 = math.exp %90 : vector<8x512xf32>
    %cst_28 = arith.constant 1.000000e+00 : f32
    %92 = vector.broadcast %cst_28 : f32 to vector<8x512xf32>
    %93 = arith.addf %92, %91 : vector<8x512xf32>
    %94 = arith.divf %92, %93 : vector<8x512xf32>
    %95 = arith.mulf %89, %94 : vector<8x512xf32>
    %96 = tpu.concatenate %95, %0 in 0 : vector<8x512xf32>, vector<4x512xf32> -> vector<12x512xf32>
    %97 = arith.truncf %96 : vector<12x512xf32> to vector<12x512xbf16>
    %c0_29 = arith.constant 0 : index
    %c0_30 = arith.constant 0 : index
    %98 = vector.load %arg6[%c0_29, %c0_30] : memref<16x12xbf16, #tpu.memory_space<vmem>>, vector<16x12xbf16>
    %cst_31 = arith.constant dense<0.000000e+00> : vector<16x512xf32>
    %99 = tpu.matmul %98, %97, %cst_31 {dimension_numbers = #tpu.dot_dimension_numbers<[1], [0], [0], [1], [0, 0, 1, 1], [], []>} : vector<16x12xbf16>, vector<12x512xbf16>, vector<16x512xf32> -> vector<16x512xf32>
    %c0_32 = arith.constant 0 : index
    %c0_33 = arith.constant 0 : index
    %100 = vector.load %arg7[%c0_32, %c0_33] : memref<16x1xf32, #tpu.memory_space<vmem>>, vector<16x1xf32>
    %101 = vector.broadcast %100 : vector<16x1xf32> to vector<16x512xf32>
    %102 = arith.addf %99, %101 : vector<16x512xf32>
    %103 = arith.negf %102 : vector<16x512xf32>
    %104 = math.exp %103 : vector<16x512xf32>
    %cst_34 = arith.constant 1.000000e+00 : f32
    %105 = vector.broadcast %cst_34 : f32 to vector<16x512xf32>
    %106 = arith.addf %105, %104 : vector<16x512xf32>
    %107 = arith.divf %105, %106 : vector<16x512xf32>
    %108 = arith.mulf %102, %107 : vector<16x512xf32>
    %c0_35 = arith.constant 0 : index
    %c0_36 = arith.constant 0 : index
    %109 = vector.load %arg9[%c0_35, %c0_36] : memref<16x512xf32, #tpu.memory_space<vmem>>, vector<16x512xf32>
    tpu.vector_store %arg9[%c0_35, %c0_36], %108 {strides = array<i32>} : memref<16x512xf32, #tpu.memory_space<vmem>>, vector<16x512xf32>,
    return
  }
}

</mosaic_0001>

<llo_original>
// kernel: detector_block.1
$region0: #{detector_block.1}
  #allocation0 [shape = 'u32[]', space=smem, size = 0x4, offset = 0x4, fixed_abs, tag = 'smem constant byte address 0x4 - core index']
  #allocation1 [shape = 'u32[144,128]{1,0:T(1,128)}', space=vmem, size = 0x12000, scoped, tag = 'internal scratch']
  %s0 = inlined_call_operand.vmem [shape: f32[4,512], index: 0, kind: input, shape index: {}]
  %s1 = inlined_call_operand.vmem [shape: bf16[8,4], index: 1, kind: input, shape index: {}]
  %s2 = inlined_call_operand.vmem [shape: f32[8,1], index: 2, kind: input, shape index: {}]
  %s3 = inlined_call_operand.vmem [shape: f32[8,1], index: 3, kind: input, shape index: {}]
  %s4 = inlined_call_operand.vmem [shape: bf16[8,72], index: 4, kind: input, shape index: {}]
  %s5 = inlined_call_operand.vmem [shape: f32[8,1], index: 5, kind: input, shape index: {}]
  %s6 = inlined_call_operand.vmem [shape: bf16[16,12], index: 6, kind: input, shape index: {}]
  %s7 = inlined_call_operand.vmem [shape: f32[16,1], index: 7, kind: input, shape index: {}]
  %s8 = inlined_call_operand.vmem [shape: f32[9,512], index: 8, kind: input, shape index: {}]
  %s9 = inlined_call_operand.vmem [shape: f32[16,512], index: 9, kind: output, shape index: {}]
  %s10 = sld [smem:[#allocation0]]
  $region46: #{detector_block.1} parent=0
    _
  %s12 = ssub.s32 1, %s10
  %s13 = scalar_select 0, %s12, %s10
  // Predicated region
  $region2: #{detector_block.1} parent=0 // pred_check
    _
  $region3: #{detector_block.1} parent=0 // pred_check_branch
    %15 = sbr.rel (0) target = $region5
  $region4: #{detector_block.1} parent=0 // pred_region
    _
  $region5: #{detector_block.1} parent=0 // pred_fallthru
    _
  // Predicated region
  $region6: #{detector_block.1} parent=0 // pred_check
    _
  $region7: #{detector_block.1} parent=0 // pred_check_branch
    %17 = sbr.rel (0) target = $region9
  $region8: #{detector_block.1} parent=0 // pred_region
    _
  $region9: #{detector_block.1} parent=0 // pred_fallthru
    _
  // Predicated region
  $region10: #{detector_block.1} parent=0 // pred_check
    _
  $region11: #{detector_block.1} parent=0 // pred_check_branch
    %19 = sbr.rel (0) target = $region13
  $region12: #{detector_block.1} parent=0 // pred_region
    _
  $region13: #{detector_block.1} parent=0 // pred_fallthru
    _
  // Predicated region
  $region14: #{detector_block.1} parent=0 // pred_check
    _
  $region15: #{detector_block.1} parent=0 // pred_check_branch
    %21 = sbr.rel (0) target = $region17
  $region16: #{detector_block.1} parent=0 // pred_region
    _
  $region17: #{detector_block.1} parent=0 // pred_fallthru
    _
  // Predicated region
  $region18: #{detector_block.1} parent=0 // pred_check
    _
  $region19: #{detector_block.1} parent=0 // pred_check_branch
    %23 = sbr.rel (0) target = $region21
  $region20: #{detector_block.1} parent=0 // pred_region
    _
  $region21: #{detector_block.1} parent=0 // pred_fallthru
    _
  // Predicated region
  $region22: #{detector_block.1} parent=0 // pred_check
    _
  $region23: #{detector_block.1} parent=0 // pred_check_branch
    %25 = sbr.rel (0) target = $region25
  $region24: #{detector_block.1} parent=0 // pred_region
    _
  $region25: #{detector_block.1} parent=0 // pred_fallthru
    _
  // Predicated region
  $region26: #{detector_block.1} parent=0 // pred_check
    _
  $region27: #{detector_block.1} parent=0 // pred_check_branch
    %27 = sbr.rel (0) target = $region29
  $region28: #{detector_block.1} parent=0 // pred_region
    _
  $region29: #{detector_block.1} parent=0 // pred_fallthru
    _
  // Predicated region
  $region30: #{detector_block.1} parent=0 // pred_check
    _
  $region31: #{detector_block.1} parent=0 // pred_check_branch
    %29 = sbr.rel (0) target = $region33
  $region32: #{detector_block.1} parent=0 // pred_region
    _
  $region33: #{detector_block.1} parent=0 // pred_fallthru
    _
  // Predicated region
  $region34: #{detector_block.1} parent=0 // pred_check
    _
  $region35: #{detector_block.1} parent=0 // pred_check_branch
    %31 = sbr.rel (0) target = $region37
  $region36: #{detector_block.1} parent=0 // pred_region
    _
  $region37: #{detector_block.1} parent=0 // pred_fallthru
    _
  %v33 = vld [vmem:[%s0] sm:$0xff]
  %v34 = vld [vmem:[%s0 + $0x8] sm:$0xff]
  %v37 = vcombine.high %v33, %v33
  %v38 = vcombine.high %v34, %v34
  %v41 = vpack.c.bf16 %v33, %v33
  %v42 = vpack.c.bf16 %v37, %v37
  %v43 = vpack.c.bf16 %v34, %v34
  %v44 = vpack.c.bf16 %v38, %v38
  %v45 = vld [vmem:[%s1] sm:$0xf]
  %vm46 = vcmask 31744
  %v48 = vsel %vm46, %v45, 0
  %vm50 = vcmask 1041408
  %v52 = vsel %vm50, %v41, 0
  %v55 = vsel %vm50, %v42, 0
  %v58 = vsel %vm50, %v43, 0
  %v61 = vsel %vm50, %v44, 0
  %63 = vmatprep.subr.bf16.mxu0 %v55
  %64 = vmatpush1.bf16.msra.mxu0 %v52
  %65 = vmatprep.subr.bf16.mxu0 0
  %66 = vmatpush1.bf16.msra.mxu0 0
  %67 = vmatprep.subr.bf16.mxu0 0
  %68 = vmatpush1.bf16.msra.mxu0 0
  %69 = vmatprep.subr.bf16.mxu0 0
  %70 = vmatpush1.bf16.msra.mxu0 0
  %71 = vmatprep.subr.bf16.mxu0 0
  %72 = vmatpush1.bf16.msra.mxu0 0
  %73 = vmatprep.subr.bf16.mxu0 0
  %74 = vmatpush1.bf16.msra.mxu0 0
  %75 = vmatprep.subr.bf16.mxu0 0
  %76 = vmatpush1.bf16.msra.mxu0 0
  %77 = vmatprep.subr.bf16.mxu0 0
  %78 = vmatpush1.bf16.msra.mxu0 0
  %79 = vmatprep.subr.bf16.mxu0 0
  %80 = vmatpush1.bf16.msra.mxu0 0
  %81 = vmatprep.subr.bf16.mxu0 0
  %82 = vmatpush1.bf16.msra.mxu0 0
  %83 = vmatprep.subr.bf16.mxu0 0
  %84 = vmatpush1.bf16.msra.mxu0 0
  %85 = vmatprep.subr.bf16.mxu0 0
  %86 = vmatpush1.bf16.msra.mxu0 0
  %87 = vmatprep.subr.bf16.mxu0 0
  %88 = vmatpush1.bf16.msra.mxu0 0
  %89 = vmatprep.subr.bf16.mxu0 0
  %90 = vmatpush1.bf16.msra.mxu0 0
  %91 = vmatprep.subr.bf16.mxu0 0
  %92 = vmatpush1.bf16.msra.mxu0 0
  %93 = vmatprep.subr.bf16.mxu0 0
  %94 = vmatpush1.bf16.msra.mxu0 0
  %95 = vmatprep.mubr.bf16.mxu0 0
  %96 = vmatmul.mubr.bf16.gmra.mrb[0].mxu0 %v48
  %v97 = vpop.f32.mrb[0].mxu0
  %v98 = vadd.f32 0.0, %v97
  %v99 = vpop.f32.mrb[0].mxu0
  %v100 = vadd.f32 0.0, %v99
  %v101 = vpop.f32.mrb[0].mxu0
  %v102 = vpop.f32.mrb[0].mxu0
  %103 = vdwg.mxu0
  %104 = vmatprep.subr.bf16.mxu0 %v61
  %105 = vmatpush1.bf16.msra.mxu0 %v58
  %106 = vmatprep.subr.bf16.mxu0 0
  %107 = vmatpush1.bf16.msra.mxu0 0
  %108 = vmatprep.subr.bf16.mxu0 0
  %109 = vmatpush1.bf16.msra.mxu0 0
  %110 = vmatprep.subr.bf16.mxu0 0
  %111 = vmatpush1.bf16.msra.mxu0 0
  %112 = vmatprep.subr.bf16.mxu0 0
  %113 = vmatpush1.bf16.msra.mxu0 0
  %114 = vmatprep.subr.bf16.mxu0 0
  %115 = vmatpush1.bf16.msra.mxu0 0
  %116 = vmatprep.subr.bf16.mxu0 0
  %117 = vmatpush1.bf16.msra.mxu0 0
  %118 = vmatprep.subr.bf16.mxu0 0
  %119 = vmatpush1.bf16.msra.mxu0 0
  %120 = vmatprep.subr.bf16.mxu0 0
  %121 = vmatpush1.bf16.msra.mxu0 0
  %122 = vmatprep.subr.bf16.mxu0 0
  %123 = vmatpush1.bf16.msra.mxu0 0
  %124 = vmatprep.subr.bf16.mxu0 0
  %125 = vmatpush1.bf16.msra.mxu0 0
  %126 = vmatprep.subr.bf16.mxu0 0
  %127 = vmatpush1.bf16.msra.mxu0 0
  %128 = vmatprep.subr.bf16.mxu0 0
  %129 = vmatpush1.bf16.msra.mxu0 0
  %130 = vmatprep.subr.bf16.mxu0 0
  %131 = vmatpush1.bf16.msra.mxu0 0
  %132 = vmatprep.subr.bf16.mxu0 0
  %133 = vmatpush1.bf16.msra.mxu0 0
  %134 = vmatprep.subr.bf16.mxu0 0
  %135 = vmatpush1.bf16.msra.mxu0 0
  %136 = vmatprep.mubr.bf16.mxu0 0
  %137 = vmatmul.mubr.bf16.gmra.mrb[0].mxu0 %v48
  %v138 = vpop.f32.mrb[0].mxu0
  %v139 = vadd.f32 0.0, %v138
  %v140 = vpop.f32.mrb[0].mxu0
  %v141 = vadd.f32 0.0, %v140
  %v142 = vpop.f32.mrb[0].mxu0
  %v143 = vpop.f32.mrb[0].mxu0
  %144 = vdwg.mxu0
  %v145 = vadd.f32 %v98, %v100
  %v146 = vadd.f32 %v145, %v139
  %v147 = vadd.f32 %v146, %v141
  %148 = vadd.xlane.f32.xlu0 %v147
  %v149 = vpop.xlane.xlu0 %148
  %v150 = vmul.f32 %v149, 0.001953125
  %v151 = vmul.f32 %v98, %v98
  %v152 = vmul.f32 %v100, %v100
  %v153 = vmul.f32 %v139, %v139
  %v154 = vmul.f32 %v141, %v141
  %v155 = vadd.f32 %v151, %v152
  %v156 = vadd.f32 %v155, %v153
  %v157 = vadd.f32 %v156, %v154
  %158 = vadd.xlane.f32.xlu0 %v157
  %v159 = vpop.xlane.xlu0 %158
  %v160 = vmul.f32 %v159, 0.001953125
  %v161 = vmul.f32 %v150, %v150
  %v162 = vsub.f32 %v160, %v161
  %v163 = vmax.f32 %v162, 0.0
  %v164 = vld [vmem:[%s2] sm:$0xff]
  %v165 = vadd.f32 %v163, 1e-05
  %v166 = vrsqrt.pop %v165
  %v167 = vmul.f32 %v164, %v166
  %v168 = vld [vmem:[%s3] sm:$0xff]
  %v169 = vmul.f32 %v150, %v167
  %v170 = vsub.f32 %v168, %v169
  %172 = vset.pattern.permute.xlu0 0
  %173 = vperm.xlu0 %172, %v167
  %v174 = vpop.permute.xlu0 %173
  %v176 = vmul.f32 %v98, %v174
  %v177 = vmul.f32 %v100, %v174
  %v178 = vmul.f32 %v139, %v174
  %v179 = vmul.f32 %v141, %v174
  %181 = vset.pattern.permute.xlu0 0
  %182 = vperm.xlu0 %181, %v170
  %v183 = vpop.permute.xlu0 %182
  %v185 = vadd.f32 %v176, %v183
  %v186 = vadd.f32 %v177, %v183
  %v187 = vadd.f32 %v178, %v183
  %v188 = vadd.f32 %v179, %v183
  %v189 = vxor.u32 %v185, 2147483648
  %v190 = vxor.u32 %v186, 2147483648
  %v191 = vxor.u32 %v187, 2147483648
  %v192 = vxor.u32 %v188, 2147483648
  %v193 = vmul.f32 %v189, 1.442695
  %v194 = vpow.pop %v193
  %v195 = vmul.f32 %v190, 1.442695
  %v196 = vpow.pop %v195
  %v197 = vmul.f32 %v191, 1.442695
  %v198 = vpow.pop %v197
  %v199 = vmul.f32 %v192, 1.442695
  %v200 = vpow.pop %v199
  %v201 = vadd.f32 %v194, 1.0
  %v202 = vadd.f32 %v196, 1.0
  %v203 = vadd.f32 %v198, 1.0
  %v204 = vadd.f32 %v200, 1.0
  %v205 = vrcp.pop %v201
  %v206 = vmul.f32 1.0, %v205
  %v207 = vrcp.pop %v202
  %v208 = vmul.f32 1.0, %v207
  %v209 = vrcp.pop %v203
  %v210 = vmul.f32 1.0, %v209
  %v211 = vrcp.pop %v204
  %v212 = vmul.f32 1.0, %v211
  %v213 = vmul.f32 %v185, %v206
  %v214 = vmul.f32 %v186, %v208
  %v215 = vmul.f32 %v187, %v210
  %v216 = vmul.f32 %v188, %v212
  %218 = vrot.lane.b32.xlu0 %v216, 17
  %v219 = vpop.permute.xlu0 %218
  %224 = vrot.lane.b32.xlu0 %v213, 17
  %v225 = vpop.permute.xlu0 %224
  %226 = vrot.lane.b32.xlu0 %v214, 17
  %v227 = vpop.permute.xlu0 %226
  %228 = vrot.lane.b32.xlu0 %v215, 17
  %v229 = vpop.permute.xlu0 %228
  %vm230 = vcmask 138240
  %v231 = vsel %vm230, %v225, %v227
  %v232 = vsel %vm230, %v227, %v229
  %v233 = vsel %vm230, %v229, %v219
  %v238 = vsel %vm230, %v219, %v225
  %v239 = vld [vmem:[%s8] ss:$8 sm:$0xf]
  %v241 = vlaneseq
  %v242 = vshrl.u32 %v241, 7
  %v243 = vsub.s32 0, %v242
  %v244 = vrot.slane %v239, %v243
  %v245 = vlaneseq
  %v246 = vshrl.u32 %v245, 7
  %v247 = vsub.s32 1, %v246
  %v248 = vrot.slane %v239, %v247
  %v249 = vlaneseq
  %v250 = vshrl.u32 %v249, 7
  %v251 = vsub.s32 2, %v250
  %v252 = vrot.slane %v239, %v251
  %v253 = vlaneseq
  %v254 = vshrl.u32 %v253, 7
  %v255 = vsub.s32 3, %v254
  %v256 = vrot.slane %v239, %v255
  %v261 = vmul.f32 %v238, %v244
  %v262 = vmul.f32 %v231, %v248
  %v263 = vmul.f32 %v232, %v252
  %v264 = vmul.f32 %v233, %v256
  %265 = vrot.lane.b32.xlu0 %v216, 16
  %v266 = vpop.permute.xlu0 %265
  %268 = vrot.lane.b32.xlu0 %v213, 16
  %v269 = vpop.permute.xlu0 %268
  %270 = vrot.lane.b32.xlu0 %v214, 16
  %v271 = vpop.permute.xlu0 %270
  %272 = vrot.lane.b32.xlu0 %v215, 16
  %v273 = vpop.permute.xlu0 %272
  %vm274 = vcmask 130048
  %v275 = vsel %vm274, %v269, %v271
  %v276 = vsel %vm274, %v271, %v273
  %v277 = vsel %vm274, %v273, %v266
  %v282 = vsel %vm274, %v266, %v269
  %s283 = scalar_lea.vmem %s8, 1
  %v284 = vld [vmem:[%s283] ss:$8 sm:$0xf]
  %v286 = vlaneseq
  %v287 = vshrl.u32 %v286, 7
  %v288 = vsub.s32 0, %v287
  %v289 = vrot.slane %v284, %v288
  %v290 = vlaneseq
  %v291 = vshrl.u32 %v290, 7
  %v292 = vsub.s32 1, %v291
  %v293 = vrot.slane %v284, %v292
  %v294 = vlaneseq
  %v295 = vshrl.u32 %v294, 7
  %v296 = vsub.s32 2, %v295
  %v297 = vrot.slane %v284, %v296
  %v298 = vlaneseq
  %v299 = vshrl.u32 %v298, 7
  %v300 = vsub.s32 3, %v299
  %v301 = vrot.slane %v284, %v300
  %v306 = vmul.f32 %v282, %v289
  %v307 = vmul.f32 %v275, %v293
  %v308 = vmul.f32 %v276, %v297
  %v309 = vmul.f32 %v277, %v301
  %310 = vrot.lane.b32.xlu0 %v216, 15
  %v311 = vpop.permute.xlu0 %310
  %313 = vrot.lane.b32.xlu0 %v213, 15
  %v314 = vpop.permute.xlu0 %313
  %315 = vrot.lane.b32.xlu0 %v214, 15
  %v316 = vpop.permute.xlu0 %315
  %317 = vrot.lane.b32.xlu0 %v215, 15
  %v318 = vpop.permute.xlu0 %317
  %vm319 = vcmask 121856
  %v320 = vsel %vm319, %v314, %v316
  %v321 = vsel %vm319, %v316, %v318
  %v322 = vsel %vm319, %v318, %v311
  %v327 = vsel %vm319, %v311, %v314
  %s328 = scalar_lea.vmem %s8, 2
  %v329 = vld [vmem:[%s328] ss:$8 sm:$0xf]
  %v331 = vlaneseq
  %v332 = vshrl.u32 %v331, 7
  %v333 = vsub.s32 0, %v332
  %v334 = vrot.slane %v329, %v333
  %v335 = vlaneseq
  %v336 = vshrl.u32 %v335, 7
  %v337 = vsub.s32 1, %v336
  %v338 = vrot.slane %v329, %v337
  %v339 = vlaneseq
  %v340 = vshrl.u32 %v339, 7
  %v341 = vsub.s32 2, %v340
  %v342 = vrot.slane %v329, %v341
  %v343 = vlaneseq
  %v344 = vshrl.u32 %v343, 7
  %v345 = vsub.s32 3, %v344
  %v346 = vrot.slane %v329, %v345
  %v351 = vmul.f32 %v327, %v334
  %v352 = vmul.f32 %v320, %v338
  %v353 = vmul.f32 %v321, %v342
  %v354 = vmul.f32 %v322, %v346
  %355 = vrot.lane.b32.xlu0 %v216, 1
  %v356 = vpop.permute.xlu0 %355
  %358 = vrot.lane.b32.xlu0 %v213, 1
  %v359 = vpop.permute.xlu0 %358
  %360 = vrot.lane.b32.xlu0 %v214, 1
  %v361 = vpop.permute.xlu0 %360
  %362 = vrot.lane.b32.xlu0 %v215, 1
  %v363 = vpop.permute.xlu0 %362
  %vm364 = vcmask 7168
  %v365 = vsel %vm364, %v359, %v361
  %v366 = vsel %vm364, %v361, %v363
  %v367 = vsel %vm364, %v363, %v356
  %v372 = vsel %vm364, %v356, %v359
  %s373 = scalar_lea.vmem %s8, 3
  %v374 = vld [vmem:[%s373] ss:$8 sm:$0xf]
  %v376 = vlaneseq
  %v377 = vshrl.u32 %v376, 7
  %v378 = vsub.s32 0, %v377
  %v379 = vrot.slane %v374, %v378
  %v380 = vlaneseq
  %v381 = vshrl.u32 %v380, 7
  %v382 = vsub.s32 1, %v381
  %v383 = vrot.slane %v374, %v382
  %v384 = vlaneseq
  %v385 = vshrl.u32 %v384, 7
  %v386 = vsub.s32 2, %v385
  %v387 = vrot.slane %v374, %v386
  %v388 = vlaneseq
  %v389 = vshrl.u32 %v388, 7
  %v390 = vsub.s32 3, %v389
  %v391 = vrot.slane %v374, %v390
  %v396 = vmul.f32 %v372, %v379
  %v397 = vmul.f32 %v365, %v383
  %v398 = vmul.f32 %v366, %v387
  %v399 = vmul.f32 %v367, %v391
  %400 = vrot.lane.b32.xlu0 %v213, 127
  %v401 = vpop.permute.xlu0 %400
  %402 = vrot.lane.b32.xlu0 %v214, 127
  %v403 = vpop.permute.xlu0 %402
  %404 = vrot.lane.b32.xlu0 %v215, 127
  %v405 = vpop.permute.xlu0 %404
  %406 = vrot.lane.b32.xlu0 %v216, 127
  %v407 = vpop.permute.xlu0 %406
  %vm408 = vcmask 1039360
  %v409 = vsel %vm408, %v401, %v403
  %v410 = vsel %vm408, %v403, %v405
  %v411 = vsel %vm408, %v405, %v407
  %v417 = vsel %vm408, %v407, %v401
  %s418 = scalar_lea.vmem %s8, 5
  %v419 = vld [vmem:[%s418] ss:$8 sm:$0xf]
  %v421 = vlaneseq
  %v422 = vshrl.u32 %v421, 7
  %v423 = vsub.s32 0, %v422
  %v424 = vrot.slane %v419, %v423
  %v425 = vlaneseq
  %v426 = vshrl.u32 %v425, 7
  %v427 = vsub.s32 1, %v426
  %v428 = vrot.slane %v419, %v427
  %v429 = vlaneseq
  %v430 = vshrl.u32 %v429, 7
  %v431 = vsub.s32 2, %v430
  %v432 = vrot.slane %v419, %v431
  %v433 = vlaneseq
  %v434 = vshrl.u32 %v433, 7
  %v435 = vsub.s32 3, %v434
  %v436 = vrot.slane %v419, %v435
  %v441 = vmul.f32 %v409, %v424
  %v442 = vmul.f32 %v410, %v428
  %v443 = vmul.f32 %v411, %v432
  %v444 = vmul.f32 %v417, %v436
  %445 = vrot.lane.b32.xlu0 %v213, 113
  %v446 = vpop.permute.xlu0 %445
  %447 = vrot.lane.b32.xlu0 %v214, 113
  %v448 = vpop.permute.xlu0 %447
  %449 = vrot.lane.b32.xlu0 %v215, 113
  %v450 = vpop.permute.xlu0 %449
  %451 = vrot.lane.b32.xlu0 %v216, 113
  %v452 = vpop.permute.xlu0 %451
  %vm453 = vcmask 924672
  %v454 = vsel %vm453, %v446, %v448
  %v455 = vsel %vm453, %v448, %v450
  %v456 = vsel %vm453, %v450, %v452
  %v462 = vsel %vm453, %v452, %v446
  %s463 = scalar_lea.vmem %s8, 6
  %v464 = vld [vmem:[%s463] ss:$8 sm:$0xf]
  %v466 = vlaneseq
  %v467 = vshrl.u32 %v466, 7
  %v468 = vsub.s32 0, %v467
  %v469 = vrot.slane %v464, %v468
  %v470 = vlaneseq
  %v471 = vshrl.u32 %v470, 7
  %v472 = vsub.s32 1, %v471
  %v473 = vrot.slane %v464, %v472
  %v474 = vlaneseq
  %v475 = vshrl.u32 %v474, 7
  %v476 = vsub.s32 2, %v475
  %v477 = vrot.slane %v464, %v476
  %v478 = vlaneseq
  %v479 = vshrl.u32 %v478, 7
  %v480 = vsub.s32 3, %v479
  %v481 = vrot.slane %v464, %v480
  %v486 = vmul.f32 %v454, %v469
  %v487 = vmul.f32 %v455, %v473
  %v488 = vmul.f32 %v456, %v477
  %v489 = vmul.f32 %v462, %v481
  %490 = vrot.lane.b32.xlu0 %v213, 112
  %v491 = vpop.permute.xlu0 %490
  %492 = vrot.lane.b32.xlu0 %v214, 112
  %v493 = vpop.permute.xlu0 %492
  %494 = vrot.lane.b32.xlu0 %v215, 112
  %v495 = vpop.permute.xlu0 %494
  %496 = vrot.lane.b32.xlu0 %v216, 112
  %v497 = vpop.permute.xlu0 %496
  %vm498 = vcmask 916480
  %v499 = vsel %vm498, %v491, %v493
  %v500 = vsel %vm498, %v493, %v495
  %v501 = vsel %vm498, %v495, %v497
  %v507 = vsel %vm498, %v497, %v491
  %s508 = scalar_lea.vmem %s8, 7
  %v509 = vld [vmem:[%s508] ss:$8 sm:$0xf]
  %v511 = vlaneseq
  %v512 = vshrl.u32 %v511, 7
  %v513 = vsub.s32 0, %v512
  %v514 = vrot.slane %v509, %v513
  %v515 = vlaneseq
  %v516 = vshrl.u32 %v515, 7
  %v517 = vsub.s32 1, %v516
  %v518 = vrot.slane %v509, %v517
  %v519 = vlaneseq
  %v520 = vshrl.u32 %v519, 7
  %v521 = vsub.s32 2, %v520
  %v522 = vrot.slane %v509, %v521
  %v523 = vlaneseq
  %v524 = vshrl.u32 %v523, 7
  %v525 = vsub.s32 3, %v524
  %v526 = vrot.slane %v509, %v525
  %v531 = vmul.f32 %v499, %v514
  %v532 = vmul.f32 %v500, %v518
  %v533 = vmul.f32 %v501, %v522
  %v534 = vmul.f32 %v507, %v526
  %535 = vrot.lane.b32.xlu0 %v213, 111
  %v536 = vpop.permute.xlu0 %535
  %537 = vrot.lane.b32.xlu0 %v214, 111
  %v538 = vpop.permute.xlu0 %537
  %539 = vrot.lane.b32.xlu0 %v215, 111
  %v540 = vpop.permute.xlu0 %539
  %541 = vrot.lane.b32.xlu0 %v216, 111
  %v542 = vpop.permute.xlu0 %541
  %vm543 = vcmask 908288
  %v544 = vsel %vm543, %v536, %v538
  %v545 = vsel %vm543, %v538, %v540
  %v546 = vsel %vm543, %v540, %v542
  %v552 = vsel %vm543, %v542, %v536
  %s553 = scalar_lea.vmem %s8, 32
  %v554 = vld [vmem:[%s553] ss:$8 sm:$0xf]
  %v556 = vlaneseq
  %v557 = vshrl.u32 %v556, 7
  %v558 = vsub.s32 0, %v557
  %v559 = vrot.slane %v554, %v558
  %v560 = vlaneseq
  %v561 = vshrl.u32 %v560, 7
  %v562 = vsub.s32 1, %v561
  %v563 = vrot.slane %v554, %v562
  %v564 = vlaneseq
  %v565 = vshrl.u32 %v564, 7
  %v566 = vsub.s32 2, %v565
  %v567 = vrot.slane %v554, %v566
  %v568 = vlaneseq
  %v569 = vshrl.u32 %v568, 7
  %v570 = vsub.s32 3, %v569
  %v571 = vrot.slane %v554, %v570
  %v576 = vmul.f32 %v544, %v559
  %v577 = vmul.f32 %v545, %v563
  %v578 = vmul.f32 %v546, %v567
  %v579 = vmul.f32 %v552, %v571
  %v580 = vpack.c.bf16 %v306, %v261
  %v581 = vpack.c.bf16 %v307, %v262
  %v582 = vpack.c.bf16 %v308, %v263
  %v583 = vpack.c.bf16 %v309, %v264
  %v584 = vpack.c.bf16 %v396, %v351
  %v585 = vpack.c.bf16 %v397, %v352
  %v586 = vpack.c.bf16 %v398, %v353
  %v587 = vpack.c.bf16 %v399, %v354
  %v588 = vpack.c.bf16 %v441, %v213
  %v589 = vpack.c.bf16 %v442, %v214
  %v590 = vpack.c.bf16 %v443, %v215
  %v591 = vpack.c.bf16 %v444, %v216
  %v592 = vpack.c.bf16 %v531, %v486
  %v593 = vpack.c.bf16 %v532, %v487
  %v594 = vpack.c.bf16 %v533, %v488
  %v595 = vpack.c.bf16 %v534, %v489
  %v596 = vpack.c.bf16 %v576, %v576
  %v597 = vpack.c.bf16 %v577, %v577
  %v598 = vpack.c.bf16 %v578, %v578
  %v599 = vpack.c.bf16 %v579, %v579
  %v600 = vld [vmem:[%s4] sm:$0xf]
  %v601 = vld [vmem:[%s5] sm:$0xff]
  %603 = vset.pattern.permute.xlu0 0
  %604 = vperm.xlu0 %603, %v601
  %v605 = vpop.permute.xlu0 %604
  %vm607 = vcmask 588800
  %v609 = vsel %vm607, %v600, 0
  %vm611 = vcmask 1043456
  %v613 = vsel %vm611, %v596, 0
  %v616 = vsel %vm611, %v597, 0
  %v619 = vsel %vm611, %v598, 0
  %v622 = vsel %vm611, %v599, 0
  %624 = vmatprep.subr.bf16.mxu0 %v581
  %625 = vmatpush1.bf16.msra.mxu0 %v580
  %626 = vmatprep.subr.bf16.mxu0 %v585
  %627 = vmatpush1.bf16.msra.mxu0 %v584
  %628 = vmatprep.subr.bf16.mxu0 %v589
  %629 = vmatpush1.bf16.msra.mxu0 %v588
  %630 = vmatprep.subr.bf16.mxu0 %v593
  %631 = vmatpush1.bf16.msra.mxu0 %v592
  %632 = vmatprep.subr.bf16.mxu0 %v616
  %633 = vmatpush1.bf16.msra.mxu0 %v613
  %634 = vmatprep.subr.bf16.mxu0 0
  %635 = vmatpush1.bf16.msra.mxu0 0
  %636 = vmatprep.subr.bf16.mxu0 0
  %637 = vmatpush1.bf16.msra.mxu0 0
  %638 = vmatprep.subr.bf16.mxu0 0
  %639 = vmatpush1.bf16.msra.mxu0 0
  %640 = vmatprep.subr.bf16.mxu0 0
  %641 = vmatpush1.bf16.msra.mxu0 0
  %642 = vmatprep.subr.bf16.mxu0 0
  %643 = vmatpush1.bf16.msra.mxu0 0
  %644 = vmatprep.subr.bf16.mxu0 0
  %645 = vmatpush1.bf16.msra.mxu0 0
  %646 = vmatprep.subr.bf16.mxu0 0
  %647 = vmatpush1.bf16.msra.mxu0 0
  %648 = vmatprep.subr.bf16.mxu0 0
  %649 = vmatpush1.bf16.msra.mxu0 0
  %650 = vmatprep.subr.bf16.mxu0 0
  %651 = vmatpush1.bf16.msra.mxu0 0
  %652 = vmatprep.subr.bf16.mxu0 0
  %653 = vmatpush1.bf16.msra.mxu0 0
  %654 = vmatprep.subr.bf16.mxu0 0
  %655 = vmatpush1.bf16.msra.mxu0 0
  %656 = vmatprep.mubr.bf16.mxu0 0
  %657 = vmatmul.mubr.bf16.gmra.mrb[0].mxu0 %v609
  %v658 = vpop.f32.mrb[0].mxu0
  %v659 = vadd.f32 %v605, %v658
  %v660 = vpop.f32.mrb[0].mxu0
  %v661 = vadd.f32 %v605, %v660
  %v662 = vpop.f32.mrb[0].mxu0
  %v663 = vpop.f32.mrb[0].mxu0
  %664 = vdwg.mxu0
  %665 = vmatprep.subr.bf16.mxu0 %v583
  %666 = vmatpush1.bf16.msra.mxu0 %v582
  %667 = vmatprep.subr.bf16.mxu0 %v587
  %668 = vmatpush1.bf16.msra.mxu0 %v586
  %669 = vmatprep.subr.bf16.mxu0 %v591
  %670 = vmatpush1.bf16.msra.mxu0 %v590
  %671 = vmatprep.subr.bf16.mxu0 %v595
  %672 = vmatpush1.bf16.msra.mxu0 %v594
  %673 = vmatprep.subr.bf16.mxu0 %v622
  %674 = vmatpush1.bf16.msra.mxu0 %v619
  %675 = vmatprep.subr.bf16.mxu0 0
  %676 = vmatpush1.bf16.msra.mxu0 0
  %677 = vmatprep.subr.bf16.mxu0 0
  %678 = vmatpush1.bf16.msra.mxu0 0
  %679 = vmatprep.subr.bf16.mxu0 0
  %680 = vmatpush1.bf16.msra.mxu0 0
  %681 = vmatprep.subr.bf16.mxu0 0
  %682 = vmatpush1.bf16.msra.mxu0 0
  %683 = vmatprep.subr.bf16.mxu0 0
  %684 = vmatpush1.bf16.msra.mxu0 0
  %685 = vmatprep.subr.bf16.mxu0 0
  %686 = vmatpush1.bf16.msra.mxu0 0
  %687 = vmatprep.subr.bf16.mxu0 0
  %688 = vmatpush1.bf16.msra.mxu0 0
  %689 = vmatprep.subr.bf16.mxu0 0
  %690 = vmatpush1.bf16.msra.mxu0 0
  %691 = vmatprep.subr.bf16.mxu0 0
  %692 = vmatpush1.bf16.msra.mxu0 0
  %693 = vmatprep.subr.bf16.mxu0 0
  %694 = vmatpush1.bf16.msra.mxu0 0
  %695 = vmatprep.subr.bf16.mxu0 0
  %696 = vmatpush1.bf16.msra.mxu0 0
  %697 = vmatprep.mubr.bf16.mxu0 0
  %698 = vmatmul.mubr.bf16.gmra.mrb[0].mxu0 %v609
  %v699 = vpop.f32.mrb[0].mxu0
  %v700 = vadd.f32 %v605, %v699
  %v701 = vpop.f32.mrb[0].mxu0
  %v702 = vadd.f32 %v605, %v701
  %v703 = vpop.f32.mrb[0].mxu0
  %v704 = vpop.f32.mrb[0].mxu0
  %705 = vdwg.mxu0
  %v706 = vxor.u32 %v659, 2147483648
  %v707 = vxor.u32 %v661, 2147483648
  %v708 = vxor.u32 %v700, 2147483648
  %v709 = vxor.u32 %v702, 2147483648
  %v710 = vmul.f32 %v706, 1.442695
  %v711 = vpow.pop %v710
  %v712 = vmul.f32 %v707, 1.442695
  %v713 = vpow.pop %v712
  %v714 = vmul.f32 %v708, 1.442695
  %v715 = vpow.pop %v714
  %v716 = vmul.f32 %v709, 1.442695
  %v717 = vpow.pop %v716
  %v718 = vadd.f32 %v711, 1.0
  %v719 = vadd.f32 %v713, 1.0
  %v720 = vadd.f32 %v715, 1.0
  %v721 = vadd.f32 %v717, 1.0
  %v722 = vrcp.pop %v718
  %v723 = vmul.f32 1.0, %v722
  %v724 = vrcp.pop %v719
  %v725 = vmul.f32 1.0, %v724
  %v726 = vrcp.pop %v720
  %v727 = vmul.f32 1.0, %v726
  %v728 = vrcp.pop %v721
  %v729 = vmul.f32 1.0, %v728
  %v730 = vmul.f32 %v659, %v723
  %v731 = vmul.f32 %v661, %v725
  %v732 = vmul.f32 %v700, %v727
  %v733 = vmul.f32 %v702, %v729
  %v734 = vpack.c.bf16 %v33, %v730
  %v735 = vpack.c.bf16 %v37, %v731
  %v736 = vpack.c.bf16 %v34, %v732
  %v737 = vpack.c.bf16 %v38, %v733
  %v738 = vld [vmem:[%s6] sm:$0xf]
  %v739 = vld [vmem:[%s6 + $0x4] sm:$0xf]
  %v740 = vld [vmem:[%s7] sm:$0xff]
  %v741 = vld [vmem:[%s7 + $0x8] sm:$0xff]
  %743 = vset.pattern.permute.xlu0 0
  %744 = vperm.xlu0 %743, %v740
  %v745 = vpop.permute.xlu0 %744
  %748 = vset.pattern.permute.xlu0 0
  %749 = vperm.xlu0 %748, %v741
  %v750 = vpop.permute.xlu0 %749
  %v754 = vunpack.c.l.b16 %v738
  %v755 = vunpack.c.l.b16 %v739
  %v756 = vpack.c.b16 %v755, %v754
  %vm757 = vcmask 97280
  %v759 = vsel %vm757, %v756, 0
  %vm761 = vcmask 1045504
  %v763 = vsel %vm761, %v734, 0
  %v766 = vsel %vm761, %v735, 0
  %v769 = vsel %vm761, %v736, 0
  %v772 = vsel %vm761, %v737, 0
  %774 = vmatprep.subr.bf16.mxu0 %v766
  %775 = vmatpush1.bf16.msra.mxu0 %v763
  %776 = vmatprep.subr.bf16.mxu0 0
  %777 = vmatpush1.bf16.msra.mxu0 0
  %778 = vmatprep.subr.bf16.mxu0 0
  %779 = vmatpush1.bf16.msra.mxu0 0
  %780 = vmatprep.subr.bf16.mxu0 0
  %781 = vmatpush1.bf16.msra.mxu0 0
  %782 = vmatprep.subr.bf16.mxu0 0
  %783 = vmatpush1.bf16.msra.mxu0 0
  %784 = vmatprep.subr.bf16.mxu0 0
  %785 = vmatpush1.bf16.msra.mxu0 0
  %786 = vmatprep.subr.bf16.mxu0 0
  %787 = vmatpush1.bf16.msra.mxu0 0
  %788 = vmatprep.subr.bf16.mxu0 0
  %789 = vmatpush1.bf16.msra.mxu0 0
  %790 = vmatprep.subr.bf16.mxu0 0
  %791 = vmatpush1.bf16.msra.mxu0 0
  %792 = vmatprep.subr.bf16.mxu0 0
  %793 = vmatpush1.bf16.msra.mxu0 0
  %794 = vmatprep.subr.bf16.mxu0 0
  %795 = vmatpush1.bf16.msra.mxu0 0
  %796 = vmatprep.subr.bf16.mxu0 0
  %797 = vmatpush1.bf16.msra.mxu0 0
  %798 = vmatprep.subr.bf16.mxu0 0
  %799 = vmatpush1.bf16.msra.mxu0 0
  %800 = vmatprep.subr.bf16.mxu0 0
  %801 = vmatpush1.bf16.msra.mxu0 0
  %802 = vmatprep.subr.bf16.mxu0 0
  %803 = vmatpush1.bf16.msra.mxu0 0
  %804 = vmatprep.subr.bf16.mxu0 0
  %805 = vmatpush1.bf16.msra.mxu0 0
  %806 = vmatprep.mubr.bf16.mxu0 0
  %807 = vmatmul.mubr.bf16.gmra.mrb[0].mxu0 %v759
  %v808 = vpop.f32.mrb[0].mxu0
  %v809 = vadd.f32 %v745, %v808
  %v810 = vpop.f32.mrb[0].mxu0
  %v811 = vadd.f32 %v745, %v810
  %v812 = vpop.f32.mrb[0].mxu0
  %v813 = vadd.f32 %v750, %v812
  %v814 = vpop.f32.mrb[0].mxu0
  %v815 = vadd.f32 %v750, %v814
  %816 = vdwg.mxu0
  %817 = vmatprep.subr.bf16.mxu0 %v772
  %818 = vmatpush1.bf16.msra.mxu0 %v769
  %819 = vmatprep.subr.bf16.mxu0 0
  %820 = vmatpush1.bf16.msra.mxu0 0
  %821 = vmatprep.subr.bf16.mxu0 0
  %822 = vmatpush1.bf16.msra.mxu0 0
  %823 = vmatprep.subr.bf16.mxu0 0
  %824 = vmatpush1.bf16.msra.mxu0 0
  %825 = vmatprep.subr.bf16.mxu0 0
  %826 = vmatpush1.bf16.msra.mxu0 0
  %827 = vmatprep.subr.bf16.mxu0 0
  %828 = vmatpush1.bf16.msra.mxu0 0
  %829 = vmatprep.subr.bf16.mxu0 0
  %830 = vmatpush1.bf16.msra.mxu0 0
  %831 = vmatprep.subr.bf16.mxu0 0
  %832 = vmatpush1.bf16.msra.mxu0 0
  %833 = vmatprep.subr.bf16.mxu0 0
  %834 = vmatpush1.bf16.msra.mxu0 0
  %835 = vmatprep.subr.bf16.mxu0 0
  %836 = vmatpush1.bf16.msra.mxu0 0
  %837 = vmatprep.subr.bf16.mxu0 0
  %838 = vmatpush1.bf16.msra.mxu0 0
  %839 = vmatprep.subr.bf16.mxu0 0
  %840 = vmatpush1.bf16.msra.mxu0 0
  %841 = vmatprep.subr.bf16.mxu0 0
  %842 = vmatpush1.bf16.msra.mxu0 0
  %843 = vmatprep.subr.bf16.mxu0 0
  %844 = vmatpush1.bf16.msra.mxu0 0
  %845 = vmatprep.subr.bf16.mxu0 0
  %846 = vmatpush1.bf16.msra.mxu0 0
  %847 = vmatprep.subr.bf16.mxu0 0
  %848 = vmatpush1.bf16.msra.mxu0 0
  %849 = vmatprep.mubr.bf16.mxu0 0
  %850 = vmatmul.mubr.bf16.gmra.mrb[0].mxu0 %v759
  %v851 = vpop.f32.mrb[0].mxu0
  %v852 = vadd.f32 %v745, %v851
  %v853 = vpop.f32.mrb[0].mxu0
  %v854 = vadd.f32 %v745, %v853
  %v855 = vpop.f32.mrb[0].mxu0
  %v856 = vadd.f32 %v750, %v855
  %v857 = vpop.f32.mrb[0].mxu0
  %v858 = vadd.f32 %v750, %v857
  %859 = vdwg.mxu0
  %v860 = vxor.u32 %v809, 2147483648
  %v861 = vxor.u32 %v811, 2147483648
  %v862 = vxor.u32 %v852, 2147483648
  %v863 = vxor.u32 %v854, 2147483648
  %v864 = vxor.u32 %v813, 2147483648
  %v865 = vxor.u32 %v815, 2147483648
  %v866 = vxor.u32 %v856, 2147483648
  %v867 = vxor.u32 %v858, 2147483648
  %v868 = vmul.f32 %v860, 1.442695
  %v869 = vpow.pop %v868
  %v870 = vmul.f32 %v861, 1.442695
  %v871 = vpow.pop %v870
  %v872 = vmul.f32 %v862, 1.442695
  %v873 = vpow.pop %v872
  %v874 = vmul.f32 %v863, 1.442695
  %v875 = vpow.pop %v874
  %v876 = vmul.f32 %v864, 1.442695
  %v877 = vpow.pop %v876
  %v878 = vmul.f32 %v865, 1.442695
  %v879 = vpow.pop %v878
  %v880 = vmul.f32 %v866, 1.442695
  %v881 = vpow.pop %v880
  %v882 = vmul.f32 %v867, 1.442695
  %v883 = vpow.pop %v882
  %v884 = vadd.f32 %v869, 1.0
  %v885 = vadd.f32 %v871, 1.0
  %v886 = vadd.f32 %v873, 1.0
  %v887 = vadd.f32 %v875, 1.0
  %v888 = vadd.f32 %v877, 1.0
  %v889 = vadd.f32 %v879, 1.0
  %v890 = vadd.f32 %v881, 1.0
  %v891 = vadd.f32 %v883, 1.0
  %v892 = vrcp.pop %v884
  %v893 = vmul.f32 1.0, %v892
  %v894 = vrcp.pop %v885
  %v895 = vmul.f32 1.0, %v894
  %v896 = vrcp.pop %v886
  %v897 = vmul.f32 1.0, %v896
  %v898 = vrcp.pop %v887
  %v899 = vmul.f32 1.0, %v898
  %v900 = vrcp.pop %v888
  %v901 = vmul.f32 1.0, %v900
  %v902 = vrcp.pop %v889
  %v903 = vmul.f32 1.0, %v902
  %v904 = vrcp.pop %v890
  %v905 = vmul.f32 1.0, %v904
  %v906 = vrcp.pop %v891
  %v907 = vmul.f32 1.0, %v906
  %v908 = vmul.f32 %v809, %v893
  %v909 = vmul.f32 %v811, %v895
  %v910 = vmul.f32 %v852, %v897
  %v911 = vmul.f32 %v854, %v899
  %v912 = vmul.f32 %v813, %v901
  %v913 = vmul.f32 %v815, %v903
  %v914 = vmul.f32 %v856, %v905
  %v915 = vmul.f32 %v858, %v907
  %916 = vst [vmem:[%s9] sm:$0xff] %v908
  %917 = vst [vmem:[%s9 + $0x8] sm:$0xff] %v909
  %918 = vst [vmem:[%s9 + $0x10] sm:$0xff] %v910
  %919 = vst [vmem:[%s9 + $0x18] sm:$0xff] %v911
  %920 = vst [vmem:[%s9 + $0x20] sm:$0xff] %v912
  %921 = vst [vmem:[%s9 + $0x28] sm:$0xff] %v913
  %922 = vst [vmem:[%s9 + $0x30] sm:$0xff] %v914
  %923 = vst [vmem:[%s9 + $0x38] sm:$0xff] %v915
  // Predicated region
  $region38: #{detector_block.1} parent=0 // pred_check
    _
  $region39: #{detector_block.1} parent=0 // pred_check_branch
    %925 = sbr.rel (0) target = $region41
  $region40: #{detector_block.1} parent=0 // pred_region
    _
  $region41: #{detector_block.1} parent=0 // pred_fallthru
    _
  // Predicated region
  $region42: #{detector_block.1} parent=0 // pred_check
    _
  $region43: #{detector_block.1} parent=0 // pred_check_branch
    %927 = sbr.rel (0) target = $region45
  $region44: #{detector_block.1} parent=0 // pred_region
    _
  $region45: #{detector_block.1} parent=0 // pred_fallthru
    _

</llo_original>
